<compile_context>
chip_gen: v7x
topology: tpu7x:2x2x1
jax: 0.10.0
libtpu: 0.0.40
codegen_flags: <defaults>
</compile_context>

<pallas_src>
import functools
import math

import jax
import jax.numpy as jnp
from jax.experimental import pallas as pl
from jax.experimental.pallas import tpu as pltpu


def _attention_kernel(z_ref, w1_ref, b1_ref, w2_ref, out_ref, beta_ref, *, mxu_dtype):
    # z_ref   : (TB, M, D)  batch-major z tile (no HBM relayout in the wrapper)
    # w1_ref  : (D, H)      first Linear weight, stored transposed (x @ W1)
    # b1_ref  : (1, H)      first Linear bias
    # w2_ref  : (1, H)      second Linear weight (row layout)
    # out_ref : (TB, D)     fused output (lane-dense: D a multiple of 128)
    # beta_ref: (TB, M)     attention weights (single store per grid step)
    tb, m_count, _ = z_ref.shape

    w1 = w1_ref[...].astype(mxu_dtype)        # (D, H)   MXU operand
    b1 = b1_ref[...]                          # (1, H)   f32
    w2 = w2_ref[...]                          # (1, H)   f32

    # Per-modality (TB, D) slices; kept in a list so the weighted-sum pass reuses the
    # same loads instead of re-indexing z_ref (no duplicate vlds).
    z_slices = [z_ref[:, mi, :] for mi in range(m_count)]            # f32 (TB, D) each

    # ---- project(): one batched MXU matmul over all modalities ---------------------
    # Sublane concat is tile-aligned because TB % 8 == 0; one (M*TB, D) @ (D, H) matmul
    # replaces M tiny ones and emits the b1/w2 broadcasts exactly once.
    z_cat = jnp.concatenate([zm.astype(mxu_dtype) for zm in z_slices], axis=0)
    h = jnp.tanh(jnp.dot(z_cat, w1, preferred_element_type=jnp.float32) + b1)  # (M*TB, H) f32
    # Second Linear (H -> 1, no bias) fused as elementwise multiply + lane reduce
    # (avoids a pathological lane-width-1 (H, 1) MXU operand).
    s_all = jnp.sum(h * w2, axis=-1, keepdims=True)                   # (M*TB, 1) f32
    scores = [s_all[mi * tb:(mi + 1) * tb] for mi in range(m_count)]  # (TB, 1) each

    # ---- numerically-stable softmax over the modality axis (dim=1), f32 math -------
    s_max = scores[0]
    for mi in range(1, m_count):
        s_max = jnp.maximum(s_max, scores[mi])
    probs = [jnp.exp(s - s_max) for s in scores]
    denom = probs[0]
    for mi in range(1, m_count):
        denom = denom + probs[mi]
    # Exact reciprocal so beta rows sum to 1 to f32 accuracy.
    # (pl.reciprocal(denom, approx=True) is ~1e-3-relative and fine if acceptable.)
    inv = pl.reciprocal(denom, approx=False)                          # (TB, 1)
    betas = [p * inv for p in probs]                                  # (TB, 1) each

    # ---- weighted sum over modalities (reusing z_slices) + single beta store -------
    acc = betas[0] * z_slices[0]
    for mi in range(1, m_count):
        acc = acc + betas[mi] * z_slices[mi]
    out_ref[...] = acc.astype(out_ref.dtype)

    # Pack the M probability columns into one (TB, M) block with a layout-safe
    # iota+select, then store beta once per step.
    lane = jax.lax.broadcasted_iota(jnp.int32, (tb, m_count), 1)
    beta2d = jnp.zeros((tb, m_count), jnp.float32)
    for mi in range(m_count):
        beta2d = jnp.where(lane == mi, betas[mi], beta2d)
    beta_ref[...] = beta2d.astype(beta_ref.dtype)


def attention_forward(z, w1, b1, w2, *, block_b=None, mxu_dtype=jnp.float32):
    """Fused Attention forward.

    z : (B, M, D) float32 — batch-major, exactly the PyTorch module's input layout.
    w1: (D, H)   first Linear weight, stored transposed for x @ W1.
    b1: (H,)     first Linear bias.
    w2: (1, H)   second Linear weight (Linear(H, 1, bias=False)).
    Returns (out (B, D), beta (B, M, 1)).
    """
    B, M, D = z.shape
    H = w1.shape[1]
    if block_b is None:
        block_b = min(B, 128)           # big tiles amortize per-step overhead
    assert B % block_b == 0, "batch must be divisible by the batch tile"
    assert block_b % 8 == 0, "batch tile must be a multiple of 8 (f32 sublanes)"

    b1_2d = b1.reshape(1, H)
    w2_2d = w2.reshape(1, H)

    kernel = functools.partial(_attention_kernel, mxu_dtype=mxu_dtype)

    out, beta2d = pl.pallas_call(
        kernel,
        out_shape=(
            jax.ShapeDtypeStruct((B, D), jnp.float32),
            jax.ShapeDtypeStruct((B, M), jnp.float32),
        ),
        grid=(B // block_b,),
        in_specs=[
            pl.BlockSpec((block_b, M, D), lambda i: (i, 0, 0)),  # z tile (no transpose)
            pl.BlockSpec((D, H), lambda i: (0, 0)),              # W1 (grid-invariant)
            pl.BlockSpec((1, H), lambda i: (0, 0)),              # b1
            pl.BlockSpec((1, H), lambda i: (0, 0)),              # W2 row
        ],
        out_specs=(
            pl.BlockSpec((block_b, D), lambda i: (i, 0)),        # out (lane-dense)
            pl.BlockSpec((block_b, M), lambda i: (i, 0)),        # beta (one store/step)
        ),
        compiler_params=pltpu.CompilerParams(
            dimension_semantics=("parallel",)),                  # shard batch tiles across TCs
    )(z, w1, b1_2d, w2_2d)

    return out, beta2d[..., None]                                # (B, D), (B, M, 1)


def reference_forward(z, w1, b1, w2, mxu_dtype=jnp.float32):
    """Pure-JAX reference of the PyTorch forward, HIGHEST matmul precision so the
    comparison is not polluted by XLA's default bf16 matmul passes on TPU."""
    zc = z.astype(mxu_dtype)
    w1c = w1.astype(mxu_dtype)
    h = jnp.tanh(
        jnp.einsum("bmd,dh->bmh", zc, w1c,
                   preferred_element_type=jnp.float32,
                   precision=jax.lax.Precision.HIGHEST) + b1)          # (B, M, H)
    scores = jnp.einsum("bmh,h->bm", h, w2[0],
                        preferred_element_type=jnp.float32,
                        precision=jax.lax.Precision.HIGHEST)[..., None]  # (B, M, 1)
    beta = jax.nn.softmax(scores, axis=1)
    out = jnp.sum(beta * z, axis=1)                                    # (B, D)
    return out, beta


def linear_init(key, fan_in, shape):
    # PyTorch nn.Linear default: U(-1/sqrt(fan_in), 1/sqrt(fan_in))
    bound = 1.0 / math.sqrt(fan_in)
    return jax.random.uniform(key, shape, jnp.float32, -bound, bound)


if __name__ == "__main__":
    B = 32            # batch (number of samples)
    M = 3             # number of modalities / views being fused (softmax axis)
    IN_SIZE = 128     # in_size (lane-dense: multiple of 128)
    HIDDEN = 64       # module default hidden_size

    key = jax.random.PRNGKey(0)
    k_w1, k_b1, k_w2, k_z = jax.random.split(key, 4)

    W1 = linear_init(k_w1, IN_SIZE, (IN_SIZE, HIDDEN))   # stored transposed: z @ W1
    b1 = linear_init(k_b1, IN_SIZE, (HIDDEN,))
    W2 = linear_init(k_w2, HIDDEN, (1, HIDDEN))          # Linear(hidden, 1, bias=False)

    z = jax.random.normal(k_z, (B, M, IN_SIZE), jnp.float32)

    # Tolerance note: the kernel-vs-reference checks use 1e-2 to stay robust to the
    # TPU MXU's multi-pass handling of f32 matmuls relative to the HIGHEST-precision
    # reference; the normalization check below is precision-independent and tight.
    TOL = 1e-2

    # ---- f32 MXU-operand path -------------------------------------------------------
    # block_b=16 keeps the grid at 2 "parallel" steps so both v7x TensorCores get work;
    # on single-TC v5e/v6e, block_b=B (one fat step) is equally valid.
    out, beta = attention_forward(z, W1, b1, W2, block_b=16)
    out = jax.block_until_ready(out)
    beta = jax.block_until_ready(beta)

    out_ref, beta_ref = reference_forward(z, W1, b1, W2)
    assert out.shape == (B, IN_SIZE)
    assert beta.shape == (B, M, 1)
    assert jnp.allclose(jnp.sum(beta, axis=1), 1.0, atol=1e-4), "beta rows must sum to 1"
    assert jnp.allclose(beta, beta_ref, atol=TOL, rtol=TOL), "beta mismatch (f32 path)"
    assert jnp.allclose(out, out_ref, atol=TOL, rtol=TOL), "output mismatch (f32 path)"

    # ---- bf16 MXU-operand path (feedback item 3) -------------------------------------
    # Only the matmul operands are cast; all other math stays f32. Compared against a
    # reference that rounds the same operands.
    out_bf, beta_bf = attention_forward(z, W1, b1, W2, block_b=16, mxu_dtype=jnp.bfloat16)
    out_bf = jax.block_until_ready(out_bf)
    beta_bf = jax.block_until_ready(beta_bf)

    out_bf_ref, beta_bf_ref = reference_forward(z, W1, b1, W2, mxu_dtype=jnp.bfloat16)
    assert jnp.allclose(jnp.sum(beta_bf, axis=1), 1.0, atol=1e-4), "beta rows must sum to 1"
    assert jnp.allclose(beta_bf, beta_bf_ref, atol=TOL, rtol=TOL), "beta mismatch (bf16 path)"
    assert jnp.allclose(out_bf, out_bf_ref, atol=TOL, rtol=TOL), "output mismatch (bf16 path)"

    print("KERNEL_OK")
</pallas_src>

<mosaic_0001>
module attributes {stable_mosaic.version = 11 : i64} {
  func.func @_attention_kernel(%arg0: i32, %arg1: memref<16x3x128xf32, #tpu.memory_space<vmem>>, %arg2: memref<128x64xf32, #tpu.memory_space<vmem>>, %arg3: memref<1x64xf32, #tpu.memory_space<vmem>>, %arg4: memref<1x64xf32, #tpu.memory_space<vmem>>, %arg5: memref<16x128xf32, #tpu.memory_space<vmem>>, %arg6: memref<16x3xf32, #tpu.memory_space<vmem>>) attributes {dimension_semantics = [#tpu.dimension_semantics<parallel>], iteration_bounds = array<i64: 2>, scalar_prefetch = 0 : i64, scratch_operands = 0 : i64, tpu.core_type = #tpu.core_type<tc>, window_params = [{transform_indices = @transform_0, window_bounds = array<i64: 16, 3, 128>}, {pipeline_mode = #tpu.pipeline_mode<synchronous>, transform_indices = @transform_1, window_bounds = array<i64: 128, 64>}, {pipeline_mode = #tpu.pipeline_mode<synchronous>, transform_indices = @transform_2, window_bounds = array<i64: 1, 64>}, {pipeline_mode = #tpu.pipeline_mode<synchronous>, transform_indices = @transform_3, window_bounds = array<i64: 1, 64>}, {transform_indices = @transform_4, window_bounds = array<i64: 16, 128>}, {transform_indices = @transform_5, window_bounds = array<i64: 16, 3>}]} {
    %c0 = arith.constant 0 : index
    %c0_0 = arith.constant 0 : index
    %0 = vector.load %arg2[%c0, %c0_0] : memref<128x64xf32, #tpu.memory_space<vmem>>, vector<128x64xf32>
    %c0_1 = arith.constant 0 : index
    %c0_2 = arith.constant 0 : index
    %1 = vector.load %arg3[%c0_1, %c0_2] : memref<1x64xf32, #tpu.memory_space<vmem>>, vector<1x64xf32>
    %c0_3 = arith.constant 0 : index
    %c0_4 = arith.constant 0 : index
    %2 = vector.load %arg4[%c0_3, %c0_4] : memref<1x64xf32, #tpu.memory_space<vmem>>, vector<1x64xf32>
    %c0_5 = arith.constant 0 : index
    %c0_6 = arith.constant 0 : index
    %c0_7 = arith.constant 0 : index
    %3 = vector.load %arg1[%c0_5, %c0_6, %c0_7] : memref<16x3x128xf32, #tpu.memory_space<vmem>>, vector<16x1x128xf32>
    %4 = vector.shape_cast %3 : vector<16x1x128xf32> to vector<16x128xf32>
    %c0_8 = arith.constant 0 : index
    %c1 = arith.constant 1 : index
    %c0_9 = arith.constant 0 : index
    %5 = vector.load %arg1[%c0_8, %c1, %c0_9] : memref<16x3x128xf32, #tpu.memory_space<vmem>>, vector<16x1x128xf32>
    %6 = vector.shape_cast %5 : vector<16x1x128xf32> to vector<16x128xf32>
    %c0_10 = arith.constant 0 : index
    %c2 = arith.constant 2 : index
    %c0_11 = arith.constant 0 : index
    %7 = vector.load %arg1[%c0_10, %c2, %c0_11] : memref<16x3x128xf32, #tpu.memory_space<vmem>>, vector<16x1x128xf32>
    %8 = vector.shape_cast %7 : vector<16x1x128xf32> to vector<16x128xf32>
    %9 = tpu.concatenate %4, %6, %8 in 0 : vector<16x128xf32>, vector<16x128xf32>, vector<16x128xf32> -> vector<48x128xf32>
    %cst = arith.constant dense<0.000000e+00> : vector<48x64xf32>
    %10 = tpu.matmul %9, %0, %cst {dimension_numbers = #tpu.dot_dimension_numbers<[1], [0], [0], [1], [0, 0, 1, 1], [], []>} : vector<48x128xf32>, vector<128x64xf32>, vector<48x64xf32> -> vector<48x64xf32>
    %11 = vector.broadcast %1 : vector<1x64xf32> to vector<48x64xf32>
    %12 = arith.addf %10, %11 : vector<48x64xf32>
    %13 = math.tanh %12 : vector<48x64xf32>
    %14 = vector.broadcast %2 : vector<1x64xf32> to vector<48x64xf32>
    %15 = arith.mulf %13, %14 : vector<48x64xf32>
    %cst_12 = arith.constant dense<0.000000e+00> : vector<48xf32>
    %16 = vector.multi_reduction <add>, %15, %cst_12 [1] : vector<48x64xf32> to vector<48xf32>
    %17 = vector.shape_cast %16 : vector<48xf32> to vector<48x1xf32>
    %18 = vector.extract_strided_slice %17 {offsets = [0, 0], sizes = [16, 1], strides = [1, 1]} : vector<48x1xf32> to vector<16x1xf32>
    %19 = vector.extract_strided_slice %17 {offsets = [16, 0], sizes = [16, 1], strides = [1, 1]} : vector<48x1xf32> to vector<16x1xf32>
    %20 = vector.extract_strided_slice %17 {offsets = [32, 0], sizes = [16, 1], strides = [1, 1]} : vector<48x1xf32> to vector<16x1xf32>
    %21 = arith.maximumf %18, %19 : vector<16x1xf32>
    %22 = arith.maximumf %21, %20 : vector<16x1xf32>
    %23 = arith.subf %18, %22 : vector<16x1xf32>
    %24 = math.exp %23 : vector<16x1xf32>
    %25 = arith.subf %19, %22 : vector<16x1xf32>
    %26 = math.exp %25 : vector<16x1xf32>
    %27 = arith.subf %20, %22 : vector<16x1xf32>
    %28 = math.exp %27 : vector<16x1xf32>
    %29 = arith.addf %24, %26 : vector<16x1xf32>
    %30 = arith.addf %29, %28 : vector<16x1xf32>
    %31 = tpu.reciprocal %30 : vector<16x1xf32> -> vector<16x1xf32>
    %32 = arith.mulf %24, %31 : vector<16x1xf32>
    %33 = arith.mulf %26, %31 : vector<16x1xf32>
    %34 = arith.mulf %28, %31 : vector<16x1xf32>
    %35 = vector.broadcast %32 : vector<16x1xf32> to vector<16x128xf32>
    %36 = arith.mulf %35, %4 : vector<16x128xf32>
    %37 = vector.broadcast %33 : vector<16x1xf32> to vector<16x128xf32>
    %38 = arith.mulf %37, %6 : vector<16x128xf32>
    %39 = arith.addf %36, %38 : vector<16x128xf32>
    %40 = vector.broadcast %34 : vector<16x1xf32> to vector<16x128xf32>
    %41 = arith.mulf %40, %8 : vector<16x128xf32>
    %42 = arith.addf %39, %41 : vector<16x128xf32>
    %c0_13 = arith.constant 0 : index
    %c0_14 = arith.constant 0 : index
    %43 = vector.load %arg5[%c0_13, %c0_14] : memref<16x128xf32, #tpu.memory_space<vmem>>, vector<16x128xf32>
    tpu.vector_store %arg5[%c0_13, %c0_14], %42 {strides = array<i32>} : memref<16x128xf32, #tpu.memory_space<vmem>>, vector<16x128xf32>,
    %44 = tpu.iota {dimensions = array<i32: 1>} : vector<16x3xi32>
    %cst_15 = arith.constant 0.000000e+00 : f32
    %45 = vector.broadcast %cst_15 : f32 to vector<16x3xf32>
    %c0_i32 = arith.constant 0 : i32
    %46 = vector.broadcast %c0_i32 : i32 to vector<16x3xi32>
    %47 = arith.cmpi eq, %44, %46 : vector<16x3xi32>
    %48 = vector.shape_cast %32 : vector<16x1xf32> to vector<16x1xf32>
    %49 = vector.broadcast %48 : vector<16x1xf32> to vector<16x3xf32>
    %50 = arith.select %47, %49, %45 : vector<16x3xi1>, vector<16x3xf32>
    %c1_i32 = arith.constant 1 : i32
    %51 = vector.broadcast %c1_i32 : i32 to vector<16x3xi32>
    %52 = arith.cmpi eq, %44, %51 : vector<16x3xi32>
    %53 = vector.shape_cast %33 : vector<16x1xf32> to vector<16x1xf32>
    %54 = vector.broadcast %53 : vector<16x1xf32> to vector<16x3xf32>
    %55 = arith.select %52, %54, %50 : vector<16x3xi1>, vector<16x3xf32>
    %c2_i32 = arith.constant 2 : i32
    %56 = vector.broadcast %c2_i32 : i32 to vector<16x3xi32>
    %57 = arith.cmpi eq, %44, %56 : vector<16x3xi32>
    %58 = vector.shape_cast %34 : vector<16x1xf32> to vector<16x1xf32>
    %59 = vector.broadcast %58 : vector<16x1xf32> to vector<16x3xf32>
    %60 = arith.select %57, %59, %55 : vector<16x3xi1>, vector<16x3xf32>
    %c0_16 = arith.constant 0 : index
    %c0_17 = arith.constant 0 : index
    %61 = vector.load %arg6[%c0_16, %c0_17] : memref<16x3xf32, #tpu.memory_space<vmem>>, vector<16x3xf32>
    tpu.vector_store %arg6[%c0_16, %c0_17], %60 {strides = array<i32>} : memref<16x3xf32, #tpu.memory_space<vmem>>, vector<16x3xf32>,
    return
  }
  func.func @transform_0(%arg0: i32) -> (i32, i32, i32) {
    %c0_i32 = arith.constant 0 : i32
    %c0_i32_0 = arith.constant 0 : i32
    %c0_i32_1 = arith.constant 0 : i32
    return %arg0, %c0_i32, %c0_i32_0 : i32, i32, i32
  }
  func.func @transform_1(%arg0: i32) -> (i32, i32) {
    %c0_i32 = arith.constant 0 : i32
    %c0_i32_0 = arith.constant 0 : i32
    %c0_i32_1 = arith.constant 0 : i32
    return %c0_i32, %c0_i32_0 : i32, i32
  }
  func.func @transform_2(%arg0: i32) -> (i32, i32) {
    %c0_i32 = arith.constant 0 : i32
    %c0_i32_0 = arith.constant 0 : i32
    %c0_i32_1 = arith.constant 0 : i32
    return %c0_i32, %c0_i32_0 : i32, i32
  }
  func.func @transform_3(%arg0: i32) -> (i32, i32) {
    %c0_i32 = arith.constant 0 : i32
    %c0_i32_0 = arith.constant 0 : i32
    %c0_i32_1 = arith.constant 0 : i32
    return %c0_i32, %c0_i32_0 : i32, i32
  }
  func.func @transform_4(%arg0: i32) -> (i32, i32) {
    %c0_i32 = arith.constant 0 : i32
    %c0_i32_0 = arith.constant 0 : i32
    return %arg0, %c0_i32 : i32, i32
  }
  func.func @transform_5(%arg0: i32) -> (i32, i32) {
    %c0_i32 = arith.constant 0 : i32
    %c0_i32_0 = arith.constant 0 : i32
    return %arg0, %c0_i32 : i32, i32
  }
}

</mosaic_0001>

<llo_original>
// kernel: tpu_custom_call.1
$region0: #{tpu_custom_call.1}
  #allocation0 [shape = 'u32[]', space=smem, size = 0x4, offset = 0x4, fixed_abs, tag = 'smem constant byte address 0x4 - core index']
  #allocation1 [shape = 'u32[144,128]{1,0:T(1,128)}', space=vmem, size = 0x12000, scoped, tag = 'internal scratch']
  %s0 = inlined_call_operand.vmem [shape: f32[32,3,128], index: 0, kind: input, shape index: {}]
  %s1 = inlined_call_operand.vmem [shape: f32[128,64], index: 1, kind: input, shape index: {}]
  %s2 = inlined_call_operand.vmem [shape: f32[1,64], index: 2, kind: input, shape index: {}]
  %s3 = inlined_call_operand.vmem [shape: f32[1,64], index: 3, kind: input, shape index: {}]
  %s4 = inlined_call_operand.hbm [shape: f32[32,128], index: 4, kind: output, shape index: {0}]
  %s5 = inlined_call_operand.vmem [shape: f32[32,3], index: 5, kind: output, shape index: {1}]
  %6 = xla_tuple %s4, %s5
  %s7 = sld [smem:[#allocation0]]
  $region57: #{tpu_custom_call.1} parent=0
    _
  %s9 = ssub.s32 1, %s7
  %s10 = scalar_select 0, %s9, %s7
  $region1: #{tpu_custom_call.1} parent=0
    #allocation2 [shape = 'u8[16384]{0}', space=vmem, size = 0x4000, scoped, tag = 'output window, operand 0']
    #allocation3 [shape = 's32[2]{0}', space=sflag, size = 0x8, scoped, tag = 'scoped memory for tpu_custom_call.1']
    %11 = vsyncpa [#allocation3], 0
    %s12 = scalar_lea.sflag [#allocation3], 1
    %13 = vsyncpa %s12, 0
    loop: start=0, step=1, limit=4
    $region2: #{tpu_custom_call.1} parent=1 // loop_pre_header
      _
    $region3: #{tpu_custom_call.1} parent=1 // loop_header
      %s15 = sphi 0, %s19
      %p16 = scmp.ge.s32.totalorder %s15, 4
      %s25 = sphi 0, %s27
      %s28 = sphi 0, %s25
      %s29 = sphi 0, %s28
      %s45 = sphi 0, %s29
      %s49 = sphi 0, %s49
      %s51 = sphi 0, %s49
      %s52 = sphi 0, %s51
      %s66 = sphi 0, %s52
      %s70 = sphi 0, %s70
      %s72 = sphi 0, %s70
      %s73 = sphi 0, %s72
      %s87 = sphi 0, %s73
      %s91 = sphi 0, %s91
      %s93 = sphi 0, %s91
      %s94 = sphi 0, %s93
      %s108 = sphi 0, %s94
      %s114 = sphi 0, %s116
      %s117 = sphi 0, %s114
      %s118 = sphi 0, %s117
      %s134 = sphi 0, %s118
      %s140 = sphi 0, %s142
      %s143 = sphi 0, %s140
      %s144 = sphi 0, %s143
      %s160 = sphi 0, %s144
    $region4: #{tpu_custom_call.1} parent=1 // loop_header_branch
      %18 = sbr.rel (%p16) target = $region8
    $region5: #{tpu_custom_call.1} parent=1 // loop_body
      %s20 = ssub.s32 %s15, 1
      %s21 = ssub.s32 %s15, 2
      %s22 = sadd.s32 %s15, 1
      %s23 = ssub.s32 %s15, %s22
      %p24 = scmp.eq.s32.totalorder %s23, 0
      %s26 = sadd.s32 %s25, 1
      %s27 = scalar_select %p24, %s25, %s26
      %p30 = pneg %p24
      %p31 = scmp.eq.s32.totalorder %s15, 1
      %p32 = por %p30, %p31
      %p33 = scmp.ne.s32.totalorder %s25, %s28
      %p34 = scmp.eq.s32.totalorder %s15, 0
      %p35 = por %p33, %p34
      %p36 = scmp.ne.s32.totalorder %s25, %s28
      %p37 = scmp.eq.s32.totalorder %s20, 1
      %p38 = por %p36, %p37
      %p39 = scmp.ne.s32.totalorder %s28, %s29
      %p40 = scmp.eq.s32.totalorder %s20, 0
      %p41 = por %p39, %p40
      %p42 = scmp.ne.s32.totalorder %s28, %s29
      %p43 = scmp.eq.s32.totalorder %s21, 1
      %p44 = por %p42, %p43
      %p46 = scmp.ne.s32.totalorder %s29, %s45
      %p47 = scmp.eq.s32.totalorder %s21, 0
      %p48 = por %p46, %p47
      %s50 = sadd.s32 %s49, 1
      %p53 = scmp.eq.s32.totalorder %s15, 1
      %p54 = scmp.ne.s32.totalorder %s49, %s51
      %p55 = scmp.eq.s32.totalorder %s15, 0
      %p56 = por %p54, %p55
      %p57 = scmp.ne.s32.totalorder %s49, %s51
      %p58 = scmp.eq.s32.totalorder %s20, 1
      %p59 = por %p57, %p58
      %p60 = scmp.ne.s32.totalorder %s51, %s52
      %p61 = scmp.eq.s32.totalorder %s20, 0
      %p62 = por %p60, %p61
      %p63 = scmp.ne.s32.totalorder %s51, %s52
      %p64 = scmp.eq.s32.totalorder %s21, 1
      %p65 = por %p63, %p64
      %p67 = scmp.ne.s32.totalorder %s52, %s66
      %p68 = scmp.eq.s32.totalorder %s21, 0
      %p69 = por %p67, %p68
      %s71 = sadd.s32 %s70, 1
      %p74 = scmp.eq.s32.totalorder %s15, 1
      %p75 = scmp.ne.s32.totalorder %s70, %s72
      %p76 = scmp.eq.s32.totalorder %s15, 0
      %p77 = por %p75, %p76
      %p78 = scmp.ne.s32.totalorder %s70, %s72
      %p79 = scmp.eq.s32.totalorder %s20, 1
      %p80 = por %p78, %p79
      %p81 = scmp.ne.s32.totalorder %s72, %s73
      %p82 = scmp.eq.s32.totalorder %s20, 0
      %p83 = por %p81, %p82
      %p84 = scmp.ne.s32.totalorder %s72, %s73
      %p85 = scmp.eq.s32.totalorder %s21, 1
      %p86 = por %p84, %p85
      %p88 = scmp.ne.s32.totalorder %s73, %s87
      %p89 = scmp.eq.s32.totalorder %s21, 0
      %p90 = por %p88, %p89
      %s92 = sadd.s32 %s91, 1
      %p95 = scmp.eq.s32.totalorder %s15, 1
      %p96 = scmp.ne.s32.totalorder %s91, %s93
      %p97 = scmp.eq.s32.totalorder %s15, 0
      %p98 = por %p96, %p97
      %p99 = scmp.ne.s32.totalorder %s91, %s93
      %p100 = scmp.eq.s32.totalorder %s20, 1
      %p101 = por %p99, %p100
      %p102 = scmp.ne.s32.totalorder %s93, %s94
      %p103 = scmp.eq.s32.totalorder %s20, 0
      %p104 = por %p102, %p103
      %p105 = scmp.ne.s32.totalorder %s93, %s94
      %p106 = scmp.eq.s32.totalorder %s21, 1
      %p107 = por %p105, %p106
      %p109 = scmp.ne.s32.totalorder %s94, %s108
      %p110 = scmp.eq.s32.totalorder %s21, 0
      %p111 = por %p109, %p110
      %s112 = ssub.s32 %s15, %s22
      %p113 = scmp.eq.s32.totalorder %s112, 0
      %s115 = sadd.s32 %s114, 1
      %s116 = scalar_select %p113, %s114, %s115
      %p119 = pneg %p113
      %p120 = scmp.eq.s32.totalorder %s15, 1
      %p121 = por %p119, %p120
      %p122 = scmp.ne.s32.totalorder %s114, %s117
      %p123 = scmp.eq.s32.totalorder %s15, 0
      %p124 = por %p122, %p123
      %p125 = scmp.ne.s32.totalorder %s114, %s117
      %p126 = scmp.eq.s32.totalorder %s20, 1
      %p127 = por %p125, %p126
      %p128 = scmp.ne.s32.totalorder %s117, %s118
      %p129 = scmp.eq.s32.totalorder %s20, 0
      %p130 = por %p128, %p129
      %p131 = scmp.ne.s32.totalorder %s117, %s118
      %p132 = scmp.eq.s32.totalorder %s21, 1
      %p133 = por %p131, %p132
      %p135 = scmp.ne.s32.totalorder %s118, %s134
      %p136 = scmp.eq.s32.totalorder %s21, 0
      %p137 = por %p135, %p136
      %s138 = ssub.s32 %s15, %s22
      %p139 = scmp.eq.s32.totalorder %s138, 0
      %s141 = sadd.s32 %s140, 1
      %s142 = scalar_select %p139, %s140, %s141
      %p145 = pneg %p139
      %p146 = scmp.eq.s32.totalorder %s15, 1
      %p147 = por %p145, %p146
      %p148 = scmp.ne.s32.totalorder %s140, %s143
      %p149 = scmp.eq.s32.totalorder %s15, 0
      %p150 = por %p148, %p149
      %p151 = scmp.ne.s32.totalorder %s140, %s143
      %p152 = scmp.eq.s32.totalorder %s20, 1
      %p153 = por %p151, %p152
      %p154 = scmp.ne.s32.totalorder %s143, %s144
      %p155 = scmp.eq.s32.totalorder %s20, 0
      %p156 = por %p154, %p155
      %p157 = scmp.ne.s32.totalorder %s143, %s144
      %p158 = scmp.eq.s32.totalorder %s21, 1
      %p159 = por %p157, %p158
      %p161 = scmp.ne.s32.totalorder %s144, %s160
      %p162 = scmp.eq.s32.totalorder %s21, 0
      %p163 = por %p161, %p162
      %p164 = scmp.le.s32.totalorder 1, %s15
      %p165 = scmp.lt.s32.totalorder %s15, 3
      %p166 = pnand %p164, %p165
      %p167 = pneg %p166
      // Predicated region
      $region9: #{tpu_custom_call.1} parent=5 // pred_check
        _
      $region10: #{tpu_custom_call.1} parent=5 // pred_check_branch
        %169 = sbr.rel (%p166) target = $region12
      $region11: #{tpu_custom_call.1} parent=5 // pred_region
        %s170 = ssub.s32 %s15, 1
        // Predicated region
        $region13: #{tpu_custom_call.1} parent=11 // pred_check
          %p171 = pneg %p62
        $region14: #{tpu_custom_call.1} parent=11 // pred_check_branch
          %173 = sbr.rel (%p171) target = $region16
        $region15: #{tpu_custom_call.1} parent=11 // pred_region
          _
        $region16: #{tpu_custom_call.1} parent=11 // pred_fallthru
          _
        // Predicated region
        $region17: #{tpu_custom_call.1} parent=11 // pred_check
          %p174 = pneg %p83
        $region18: #{tpu_custom_call.1} parent=11 // pred_check_branch
          %176 = sbr.rel (%p174) target = $region20
        $region19: #{tpu_custom_call.1} parent=11 // pred_region
          _
        $region20: #{tpu_custom_call.1} parent=11 // pred_fallthru
          _
        // Predicated region
        $region21: #{tpu_custom_call.1} parent=11 // pred_check
          %p177 = pneg %p104
        $region22: #{tpu_custom_call.1} parent=11 // pred_check_branch
          %179 = sbr.rel (%p177) target = $region24
        $region23: #{tpu_custom_call.1} parent=11 // pred_region
          _
        $region24: #{tpu_custom_call.1} parent=11 // pred_fallthru
          _
      $region12: #{tpu_custom_call.1} parent=5 // pred_fallthru
        _
      %p180 = scmp.lt.s32.totalorder %s15, 2
      // Predicated region
      $region25: #{tpu_custom_call.1} parent=5 // pred_check
        %p181 = pneg %p180
      $region26: #{tpu_custom_call.1} parent=5 // pred_check_branch
        %183 = sbr.rel (%p181) target = $region28
      $region27: #{tpu_custom_call.1} parent=5 // pred_region
        // Predicated region
        $region29: #{tpu_custom_call.1} parent=27 // pred_check
          %p184 = pneg %p35
        $region30: #{tpu_custom_call.1} parent=27 // pred_check_branch
          %186 = sbr.rel (%p184) target = $region32
        $region31: #{tpu_custom_call.1} parent=27 // pred_region
          %s187 = smul.u32 16, %s15
          %p188 = scmp.lt.s32.totalorder %s187, 31
          %s189 = scalar_select %p188, %s187, 31
          %s190 = smul.addr %s189, 4
          %s191 = scalar_lea.vmem %s0, %s190
          %s192 = smul.u32 16, %s15
        $region32: #{tpu_custom_call.1} parent=27 // pred_fallthru
          _
      $region28: #{tpu_custom_call.1} parent=5 // pred_fallthru
        _
      %p193 = scmp.le.s32.totalorder 1, %s15
      %p194 = scmp.lt.s32.totalorder %s15, 3
      %p195 = pnand %p193, %p194
      %p196 = pneg %p195
      // Predicated region
      $region33: #{tpu_custom_call.1} parent=5 // pred_check
        _
      $region34: #{tpu_custom_call.1} parent=5 // pred_check_branch
        %198 = sbr.rel (%p195) target = $region36
      $region35: #{tpu_custom_call.1} parent=5 // pred_region
        %s199 = ssub.s32 %s15, 1
        %s200 = smul.u32 16, %s20
        %p201 = scmp.lt.s32.totalorder %s200, 31
        %s202 = scalar_select %p201, %s200, 31
        %s203 = smul.addr %s202, 4
        %s204 = scalar_lea.vmem %s0, %s203
        %p205 = pneg %p41
        %p206 = pneg %p38
        %p207 = pneg %p62
        %p208 = pneg %p59
        %p209 = pneg %p83
        %p210 = pneg %p80
        %p211 = pneg %p104
        %p212 = pneg %p101
        %p213 = pneg %p130
        %p214 = pneg %p127
        %s215 = sand.u32 %s117, 1
        %s216 = scalar_lea.sflag [#allocation3], %s215
        %s217 = sand.u32 %s117, 1
        %s218 = smul.addr %s217, 16
        %s219 = scalar_lea.vmem [#allocation2], %s218
        %p220 = pneg %p156
        %p221 = pneg %p153
        %s222 = smul.u32 2, %s20
        %p223 = scmp.lt.s32.totalorder %s222, 3
        %s224 = scalar_select %p223, %s222, 3
        %s225 = smul.addr %s224, 8
        %s226 = scalar_lea.vmem %s5, %s225
        %s227 = smul.u32 16, %s20
        %p228 = scmp.lt.s32.totalorder %s227, 31
        %s229 = scalar_select %p228, %s227, 31
        %s230 = smul.addr %s229, 4
        %s231 = scalar_lea.vmem %s0, %s230
        %s232 = smul.u32 16, %s20
        %s233 = smul.u32 2, %s20
        %s234 = smul.u32 2, %s20
        %p235 = scmp.lt.s32.totalorder %s234, 3
        %s236 = scalar_select %p235, %s234, 3
        %s237 = smul.addr %s236, 8
        %s238 = scalar_lea.vmem %s5, %s237
        %s239 = smul.u32 2, %s20
        %v240 = vld [vmem:[%s1] sm:$0xff]
        %v241 = vld [vmem:[%s1 + $0x8] sm:$0xff]
        %v242 = vld [vmem:[%s1 + $0x10] sm:$0xff]
        %v243 = vld [vmem:[%s1 + $0x18] sm:$0xff]
        %v244 = vld [vmem:[%s1 + $0x20] sm:$0xff]
        %v245 = vld [vmem:[%s1 + $0x28] sm:$0xff]
        %v246 = vld [vmem:[%s1 + $0x30] sm:$0xff]
        %v247 = vld [vmem:[%s1 + $0x38] sm:$0xff]
        %v248 = vld [vmem:[%s1 + $0x40] sm:$0xff]
        %v249 = vld [vmem:[%s1 + $0x48] sm:$0xff]
        %v250 = vld [vmem:[%s1 + $0x50] sm:$0xff]
        %v251 = vld [vmem:[%s1 + $0x58] sm:$0xff]
        %v252 = vld [vmem:[%s1 + $0x60] sm:$0xff]
        %v253 = vld [vmem:[%s1 + $0x68] sm:$0xff]
        %v254 = vld [vmem:[%s1 + $0x70] sm:$0xff]
        %v255 = vld [vmem:[%s1 + $0x78] sm:$0xff]
        %v256 = vld [vmem:[%s2] sm:$0x1]
        %v257 = vld [vmem:[%s3] sm:$0x1]
        %v258 = vld [vmem:[%s231] sm:$0x1]
        %v259 = vld [vmem:[%s231 + $0x4] sm:$0x1]
        %v260 = vld [vmem:[%s231 + $0x8] sm:$0x1]
        %v261 = vld [vmem:[%s231 + $0xc] sm:$0x1]
        %v262 = vld [vmem:[%s231 + $0x10] sm:$0x1]
        %v263 = vld [vmem:[%s231 + $0x14] sm:$0x1]
        %v264 = vld [vmem:[%s231 + $0x18] sm:$0x1]
        %v265 = vld [vmem:[%s231 + $0x1c] sm:$0x1]
        %v266 = vld [vmem:[%s231 + $0x20] sm:$0x1]
        %v267 = vld [vmem:[%s231 + $0x24] sm:$0x1]
        %v268 = vld [vmem:[%s231 + $0x28] sm:$0x1]
        %v269 = vld [vmem:[%s231 + $0x2c] sm:$0x1]
        %v270 = vld [vmem:[%s231 + $0x30] sm:$0x1]
        %v271 = vld [vmem:[%s231 + $0x34] sm:$0x1]
        %v272 = vld [vmem:[%s231 + $0x38] sm:$0x1]
        %v273 = vld [vmem:[%s231 + $0x3c] sm:$0x1]
        %v274 = vld [vmem:[%s231 + $0x1] sm:$0x1]
        %v275 = vld [vmem:[%s231 + $0x5] sm:$0x1]
        %v276 = vld [vmem:[%s231 + $0x9] sm:$0x1]
        %v277 = vld [vmem:[%s231 + $0xd] sm:$0x1]
        %v278 = vld [vmem:[%s231 + $0x11] sm:$0x1]
        %v279 = vld [vmem:[%s231 + $0x15] sm:$0x1]
        %v280 = vld [vmem:[%s231 + $0x19] sm:$0x1]
        %v281 = vld [vmem:[%s231 + $0x1d] sm:$0x1]
        %v282 = vld [vmem:[%s231 + $0x21] sm:$0x1]
        %v283 = vld [vmem:[%s231 + $0x25] sm:$0x1]
        %v284 = vld [vmem:[%s231 + $0x29] sm:$0x1]
        %v285 = vld [vmem:[%s231 + $0x2d] sm:$0x1]
        %v286 = vld [vmem:[%s231 + $0x31] sm:$0x1]
        %v287 = vld [vmem:[%s231 + $0x35] sm:$0x1]
        %v288 = vld [vmem:[%s231 + $0x39] sm:$0x1]
        %v289 = vld [vmem:[%s231 + $0x3d] sm:$0x1]
        %v290 = vld [vmem:[%s231 + $0x2] sm:$0x1]
        %v291 = vld [vmem:[%s231 + $0x6] sm:$0x1]
        %v292 = vld [vmem:[%s231 + $0xa] sm:$0x1]
        %v293 = vld [vmem:[%s231 + $0xe] sm:$0x1]
        %v294 = vld [vmem:[%s231 + $0x12] sm:$0x1]
        %v295 = vld [vmem:[%s231 + $0x16] sm:$0x1]
        %v296 = vld [vmem:[%s231 + $0x1a] sm:$0x1]
        %v297 = vld [vmem:[%s231 + $0x1e] sm:$0x1]
        %v298 = vld [vmem:[%s231 + $0x22] sm:$0x1]
        %v299 = vld [vmem:[%s231 + $0x26] sm:$0x1]
        %v300 = vld [vmem:[%s231 + $0x2a] sm:$0x1]
        %v301 = vld [vmem:[%s231 + $0x2e] sm:$0x1]
        %v302 = vld [vmem:[%s231 + $0x32] sm:$0x1]
        %v303 = vld [vmem:[%s231 + $0x36] sm:$0x1]
        %v304 = vld [vmem:[%s231 + $0x3a] sm:$0x1]
        %v305 = vld [vmem:[%s231 + $0x3e] sm:$0x1]
        %v322 = vrot.slane %v259, 7
        %vm323 = vcmask 1041409
        %v324 = vsel %vm323, %v322, %v258
        %v325 = vrot.slane %v260, 6
        %vm326 = vcmask 1042434
        %v327 = vsel %vm326, %v325, %v324
        %v328 = vrot.slane %v261, 5
        %vm329 = vcmask 1043459
        %v330 = vsel %vm329, %v328, %v327
        %v331 = vrot.slane %v262, 4
        %vm332 = vcmask 1044484
        %v333 = vsel %vm332, %v331, %v330
        %v334 = vrot.slane %v263, 3
        %vm335 = vcmask 1045509
        %v336 = vsel %vm335, %v334, %v333
        %v337 = vrot.slane %v264, 2
        %vm338 = vcmask 1046534
        %v339 = vsel %vm338, %v337, %v336
        %v340 = vrot.slane %v265, 1
        %vm341 = vcmask 1047559
        %v342 = vsel %vm341, %v340, %v339
        %v343 = vrot.slane %v267, 7
        %v344 = vsel %vm323, %v343, %v266
        %v345 = vrot.slane %v268, 6
        %v346 = vsel %vm326, %v345, %v344
        %v347 = vrot.slane %v269, 5
        %v348 = vsel %vm329, %v347, %v346
        %v349 = vrot.slane %v270, 4
        %v350 = vsel %vm332, %v349, %v348
        %v351 = vrot.slane %v271, 3
        %v352 = vsel %vm335, %v351, %v350
        %v353 = vrot.slane %v272, 2
        %v354 = vsel %vm338, %v353, %v352
        %v355 = vrot.slane %v273, 1
        %v356 = vsel %vm341, %v355, %v354
        %v375 = vrot.slane %v275, 7
        %v376 = vsel %vm323, %v375, %v274
        %v377 = vrot.slane %v276, 6
        %v378 = vsel %vm326, %v377, %v376
        %v379 = vrot.slane %v277, 5
        %v380 = vsel %vm329, %v379, %v378
        %v381 = vrot.slane %v278, 4
        %v382 = vsel %vm332, %v381, %v380
        %v383 = vrot.slane %v279, 3
        %v384 = vsel %vm335, %v383, %v382
        %v385 = vrot.slane %v280, 2
        %v386 = vsel %vm338, %v385, %v384
        %v387 = vrot.slane %v281, 1
        %v388 = vsel %vm341, %v387, %v386
        %v389 = vrot.slane %v283, 7
        %v390 = vsel %vm323, %v389, %v282
        %v391 = vrot.slane %v284, 6
        %v392 = vsel %vm326, %v391, %v390
        %v393 = vrot.slane %v285, 5
        %v394 = vsel %vm329, %v393, %v392
        %v395 = vrot.slane %v286, 4
        %v396 = vsel %vm332, %v395, %v394
        %v397 = vrot.slane %v287, 3
        %v398 = vsel %vm335, %v397, %v396
        %v399 = vrot.slane %v288, 2
        %v400 = vsel %vm338, %v399, %v398
        %v401 = vrot.slane %v289, 1
        %v402 = vsel %vm341, %v401, %v400
        %v421 = vrot.slane %v291, 7
        %v422 = vsel %vm323, %v421, %v290
        %v423 = vrot.slane %v292, 6
        %v424 = vsel %vm326, %v423, %v422
        %v425 = vrot.slane %v293, 5
        %v426 = vsel %vm329, %v425, %v424
        %v427 = vrot.slane %v294, 4
        %v428 = vsel %vm332, %v427, %v426
        %v429 = vrot.slane %v295, 3
        %v430 = vsel %vm335, %v429, %v428
        %v431 = vrot.slane %v296, 2
        %v432 = vsel %vm338, %v431, %v430
        %v433 = vrot.slane %v297, 1
        %v434 = vsel %vm341, %v433, %v432
        %v435 = vrot.slane %v299, 7
        %v436 = vsel %vm323, %v435, %v298
        %v437 = vrot.slane %v300, 6
        %v438 = vsel %vm326, %v437, %v436
        %v439 = vrot.slane %v301, 5
        %v440 = vsel %vm329, %v439, %v438
        %v441 = vrot.slane %v302, 4
        %v442 = vsel %vm332, %v441, %v440
        %v443 = vrot.slane %v303, 3
        %v444 = vsel %vm335, %v443, %v442
        %v445 = vrot.slane %v304, 2
        %v446 = vsel %vm338, %v445, %v444
        %v447 = vrot.slane %v305, 1
        %v448 = vsel %vm341, %v447, %v446
        %v452 = vlaneseq
        %v453 = vshrl.u32 %v452, 7
        %v454 = vsub.s32 0, %v453
        %v455 = vrot.slane %v256, %v454
        %457 = vmatprep.subr.mxu0 0.0
        %458 = vmatpush1.msra.mxu0 %v240
        %459 = vmatprep.subr.mxu0 0.0
        %460 = vmatpush1.msra.mxu0 %v241
        %461 = vmatprep.subr.mxu0 0.0
        %462 = vmatpush1.msra.mxu0 %v242
        %463 = vmatprep.subr.mxu0 0.0
        %464 = vmatpush1.msra.mxu0 %v243
        %465 = vmatprep.subr.mxu0 0.0
        %466 = vmatpush1.msra.mxu0 %v244
        %467 = vmatprep.subr.mxu0 0.0
        %468 = vmatpush1.msra.mxu0 %v245
        %469 = vmatprep.subr.mxu0 0.0
        %470 = vmatpush1.msra.mxu0 %v246
        %471 = vmatprep.subr.mxu0 0.0
        %472 = vmatpush1.msra.mxu0 %v247
        %473 = vmatprep.subr.mxu0 0.0
        %474 = vmatpush1.msra.mxu0 %v248
        %475 = vmatprep.subr.mxu0 0.0
        %476 = vmatpush1.msra.mxu0 %v249
        %477 = vmatprep.subr.mxu0 0.0
        %478 = vmatpush1.msra.mxu0 %v250
        %479 = vmatprep.subr.mxu0 0.0
        %480 = vmatpush1.msra.mxu0 %v251
        %481 = vmatprep.subr.mxu0 0.0
        %482 = vmatpush1.msra.mxu0 %v252
        %483 = vmatprep.subr.mxu0 0.0
        %484 = vmatpush1.msra.mxu0 %v253
        %485 = vmatprep.subr.mxu0 0.0
        %486 = vmatpush1.msra.mxu0 %v254
        %487 = vmatprep.subr.mxu0 0.0
        %488 = vmatpush1.msra.mxu0 %v255
        %489 = vmatprep.subr.mxu0 0.0
        %490 = vmatpush1.msra.mxu0 0.0
        %491 = vmatprep.subr.mxu0 0.0
        %492 = vmatpush1.msra.mxu0 0.0
        %493 = vmatprep.subr.mxu0 0.0
        %494 = vmatpush1.msra.mxu0 0.0
        %495 = vmatprep.subr.mxu0 0.0
        %496 = vmatpush1.msra.mxu0 0.0
        %497 = vmatprep.subr.mxu0 0.0
        %498 = vmatpush1.msra.mxu0 0.0
        %499 = vmatprep.subr.mxu0 0.0
        %500 = vmatpush1.msra.mxu0 0.0
        %501 = vmatprep.subr.mxu0 0.0
        %502 = vmatpush1.msra.mxu0 0.0
        %503 = vmatprep.subr.mxu0 0.0
        %504 = vmatpush1.msra.mxu0 0.0
        %505 = vmatprep.subr.mxu0 0.0
        %506 = vmatpush1.msra.mxu0 0.0
        %507 = vmatprep.subr.mxu0 0.0
        %508 = vmatpush1.msra.mxu0 0.0
        %509 = vmatprep.subr.mxu0 0.0
        %510 = vmatpush1.msra.mxu0 0.0
        %511 = vmatprep.subr.mxu0 0.0
        %512 = vmatpush1.msra.mxu0 0.0
        %513 = vmatprep.subr.mxu0 0.0
        %514 = vmatpush1.msra.mxu0 0.0
        %515 = vmatprep.subr.mxu0 0.0
        %516 = vmatpush1.msra.mxu0 0.0
        %517 = vmatprep.subr.mxu0 0.0
        %518 = vmatpush1.msra.mxu0 0.0
        %519 = vmatprep.subr.mxu0 0.0
        %520 = vmatpush1.msra.mxu0 0.0
        %521 = vmatprep.mubr.f32.mxu0 0.0
        %522 = vmatmul.mubr.f32.gmra.mrb[0].mxu0 %v342
        %v523 = vpop.f32.mrb[0].mxu0
        %v524 = vadd.f32 %v455, %v523
        %v525 = vpop.f32.mrb[0].mxu0
        %526 = vmatprep.mubr.f32.mxu0 0.0
        %527 = vmatmul.mubr.f32.gmra.mrb[0].mxu0 %v356
        %v528 = vpop.f32.mrb[0].mxu0
        %v529 = vadd.f32 %v455, %v528
        %v530 = vpop.f32.mrb[0].mxu0
        %531 = vmatprep.mubr.f32.mxu0 0.0
        %532 = vmatmul.mubr.f32.gmra.mrb[0].mxu0 %v388
        %v533 = vpop.f32.mrb[0].mxu0
        %v534 = vadd.f32 %v455, %v533
        %v535 = vpop.f32.mrb[0].mxu0
        %536 = vmatprep.mubr.f32.mxu0 0.0
        %537 = vmatmul.mubr.f32.gmra.mrb[0].mxu0 %v402
        %v538 = vpop.f32.mrb[0].mxu0
        %v539 = vadd.f32 %v455, %v538
        %v540 = vpop.f32.mrb[0].mxu0
        %541 = vmatprep.mubr.f32.mxu0 0.0
        %542 = vmatmul.mubr.f32.gmra.mrb[0].mxu0 %v434
        %v543 = vpop.f32.mrb[0].mxu0
        %v544 = vadd.f32 %v455, %v543
        %v545 = vpop.f32.mrb[0].mxu0
        %546 = vmatprep.mubr.f32.mxu0 0.0
        %547 = vmatmul.mubr.f32.gmra.mrb[0].mxu0 %v448
        %v548 = vpop.f32.mrb[0].mxu0
        %v549 = vadd.f32 %v455, %v548
        %v550 = vpop.f32.mrb[0].mxu0
        %551 = vdwg.mxu0
        %v552 = vtanh.pop %v524
        %v553 = vtanh.pop %v529
        %v554 = vtanh.pop %v534
        %v555 = vtanh.pop %v539
        %v556 = vtanh.pop %v544
        %v557 = vtanh.pop %v549
        %v559 = vlaneseq
        %v560 = vshrl.u32 %v559, 7
        %v561 = vsub.s32 0, %v560
        %v562 = vrot.slane %v257, %v561
        %v564 = vmul.f32 %v552, %v562
        %v565 = vmul.f32 %v553, %v562
        %v566 = vmul.f32 %v554, %v562
        %v567 = vmul.f32 %v555, %v562
        %v568 = vmul.f32 %v556, %v562
        %v569 = vmul.f32 %v557, %v562
        %vm570 = vcmask 523264
        %v571 = vsel %vm570, %v564, 0.0
        %572 = vadd.xlane.f32.xlu0 %v571
        %v573 = vpop.xlane.xlu0 %572
        %v574 = vsel %vm570, %v565, 0.0
        %575 = vadd.xlane.f32.xlu0 %v574
        %v576 = vpop.xlane.xlu0 %575
        %v577 = vsel %vm570, %v566, 0.0
        %578 = vadd.xlane.f32.xlu0 %v577
        %v579 = vpop.xlane.xlu0 %578
        %v580 = vsel %vm570, %v567, 0.0
        %581 = vadd.xlane.f32.xlu0 %v580
        %v582 = vpop.xlane.xlu0 %581
        %v583 = vsel %vm570, %v568, 0.0
        %584 = vadd.xlane.f32.xlu0 %v583
        %v585 = vpop.xlane.xlu0 %584
        %v586 = vsel %vm570, %v569, 0.0
        %587 = vadd.xlane.f32.xlu0 %v586
        %v588 = vpop.xlane.xlu0 %587
        %v589 = vmax.f32 %v573, %v579
        %v590 = vmax.f32 %v576, %v582
        %v591 = vmax.f32 %v589, %v585
        %v592 = vmax.f32 %v590, %v588
        %v593 = vsub.f32 %v573, %v591
        %v594 = vsub.f32 %v576, %v592
        %v595 = vmul.f32 %v593, 1.442695
        %v596 = vpow.pop %v595
        %v597 = vmul.f32 %v594, 1.442695
        %v598 = vpow.pop %v597
        %v599 = vsub.f32 %v579, %v591
        %v600 = vsub.f32 %v582, %v592
        %v601 = vmul.f32 %v599, 1.442695
        %v602 = vpow.pop %v601
        %v603 = vmul.f32 %v600, 1.442695
        %v604 = vpow.pop %v603
        %v605 = vsub.f32 %v585, %v591
        %v606 = vsub.f32 %v588, %v592
        %v607 = vmul.f32 %v605, 1.442695
        %v608 = vpow.pop %v607
        %v609 = vmul.f32 %v606, 1.442695
        %v610 = vpow.pop %v609
        %v611 = vadd.f32 %v596, %v602
        %v612 = vadd.f32 %v598, %v604
        %v613 = vadd.f32 %v611, %v608
        %v614 = vadd.f32 %v612, %v610
        %v615 = vrcp.pop %v613
        %v616 = vrcp.pop %v614
        %v617 = vmul.f32 %v596, %v615
        %v618 = vmul.f32 %v598, %v616
        %v619 = vmul.f32 %v602, %v615
        %v620 = vmul.f32 %v604, %v616
        %v621 = vmul.f32 %v608, %v615
        %v622 = vmul.f32 %v610, %v616
        %v623 = vmul.f32 %v617, %v342
        %v624 = vmul.f32 %v618, %v356
        %v625 = vmul.f32 %v619, %v388
        %v626 = vmul.f32 %v620, %v402
        %v627 = vadd.f32 %v623, %v625
        %v628 = vadd.f32 %v624, %v626
        %v629 = vmul.f32 %v621, %v434
        %v630 = vmul.f32 %v622, %v448
        %v631 = vadd.f32 %v627, %v629
        %v632 = vadd.f32 %v628, %v630
        %633 = vst [vmem:[%s219] sm:$0xff] %v631
        %634 = vst [vmem:[%s219 + $0x8] sm:$0xff] %v632
        %v635 = vlaneseq
        %v636 = vand.u32 %v635, 127
        %vm637 = vcmp.eq.s32.totalorder %v636, 0
        %v638 = vsel %vm637, %v617, 0.0
        %v639 = vsel %vm637, %v618, 0.0
        %vm640 = vcmp.eq.s32.totalorder %v636, 1
        %v641 = vsel %vm640, %v619, %v638
        %v642 = vsel %vm640, %v620, %v639
        %vm643 = vcmp.eq.s32.totalorder %v636, 2
        %v644 = vsel %vm643, %v621, %v641
        %v645 = vsel %vm643, %v622, %v642
        %vm646 = vcmask 23552
        %647 = vst.msk [vmem:[%s238] sm:$0xff] %vm646, %v644
        %648 = vst.msk [vmem:[%s238 + $0x8] sm:$0xff] %vm646, %v645
        %s649 = sand.u32 %s117, 1
        %s650 = scalar_lea.sflag [#allocation3], %s649
        %s651 = sand.u32 %s117, 1
        %s652 = smul.addr %s651, 16
        %s653 = scalar_lea.vmem [#allocation2], %s652
        %s654 = smul.u32 2, %s20
        %p655 = scmp.lt.s32.totalorder %s654, 3
        %s656 = scalar_select %p655, %s654, 3
        %s657 = smul.addr %s656, 8
        %s658 = scalar_lea.vmem %s5, %s657
        // Predicated region
        $region37: #{tpu_custom_call.1} parent=35 // pred_check
          %p659 = pneg %p127
        $region38: #{tpu_custom_call.1} parent=35 // pred_check_branch
          %661 = sbr.rel (%p659) target = $region40
        $region39: #{tpu_custom_call.1} parent=35 // pred_region
          %s662 = smul.u32 2, %s20
          %s664 = ssub.s32 256, 256
          %665 = vsyncadd %s650, %s664
          %s666 = smul.addr %s662, 128
          %s667 = scalar_lea.hbm %s4, %s666
          %s668 = sshll.u32 %s653, 4
          %s669 = int_to_ptr.vmem [resolvable:$true] %s668
          %674 = dma.vmem_to_hbm [thread:$0]  %s669, 256, %s667, %s650, 128, 128, 8
        $region40: #{tpu_custom_call.1} parent=35 // pred_fallthru
          _
        // Predicated region
        $region41: #{tpu_custom_call.1} parent=35 // pred_check
          %p675 = pneg %p153
        $region42: #{tpu_custom_call.1} parent=35 // pred_check_branch
          %677 = sbr.rel (%p675) target = $region44
        $region43: #{tpu_custom_call.1} parent=35 // pred_region
          %s678 = smul.u32 2, %s20
        $region44: #{tpu_custom_call.1} parent=35 // pred_fallthru
          _
      $region36: #{tpu_custom_call.1} parent=5 // pred_fallthru
        _
      %p679 = scmp.le.s32.totalorder 2, %s15
      // Predicated region
      $region45: #{tpu_custom_call.1} parent=5 // pred_check
        %p680 = pneg %p679
      $region46: #{tpu_custom_call.1} parent=5 // pred_check_branch
        %682 = sbr.rel (%p680) target = $region48
      $region47: #{tpu_custom_call.1} parent=5 // pred_region
        %s683 = ssub.s32 %s15, 2
        // Predicated region
        $region49: #{tpu_custom_call.1} parent=47 // pred_check
          %p684 = pneg %p133
        $region50: #{tpu_custom_call.1} parent=47 // pred_check_branch
          %686 = sbr.rel (%p684) target = $region52
        $region51: #{tpu_custom_call.1} parent=47 // pred_region
          %s687 = sand.u32 %s118, 1
          %s688 = scalar_lea.sflag [#allocation3], %s687
          %s689 = sand.u32 %s118, 1
          %s690 = smul.addr %s689, 16
          %s691 = scalar_lea.vmem [#allocation2], %s690
          %692 = dma.done %s688, 256
        $region52: #{tpu_custom_call.1} parent=47 // pred_fallthru
          _
        // Predicated region
        $region53: #{tpu_custom_call.1} parent=47 // pred_check
          %p693 = pneg %p159
        $region54: #{tpu_custom_call.1} parent=47 // pred_check_branch
          %695 = sbr.rel (%p693) target = $region56
        $region55: #{tpu_custom_call.1} parent=47 // pred_region
          %s696 = smul.u32 2, %s21
          %p697 = scmp.lt.s32.totalorder %s696, 3
          %s698 = scalar_select %p697, %s696, 3
          %s699 = smul.addr %s698, 8
          %s700 = scalar_lea.vmem %s5, %s699
        $region56: #{tpu_custom_call.1} parent=47 // pred_fallthru
          _
      $region48: #{tpu_custom_call.1} parent=5 // pred_fallthru
        _
    $region6: #{tpu_custom_call.1} parent=1 // loop_footer
      %s19 = sadd.s32 1, %s15
    $region7: #{tpu_custom_call.1} parent=1 // loop_footer_branch
      %14 = sbr.rel target = $region3
    $region8: #{tpu_custom_call.1} parent=1 // loop_exit
      _
    %701 = vsyncpa [#allocation3], 1
    %s702 = scalar_lea.sflag [#allocation3], 1
    %703 = vsyncpa %s702, 1

</llo_original>
